<compile_context>
chip_gen: v5e
topology: v5e:2x2
jax: 0.10.0
libtpu: 0.0.40
codegen_flags: <defaults>
</compile_context>

<pallas_src>
import functools

import jax
import jax.numpy as jnp
from jax.experimental import pallas as pl
from jax.experimental.pallas import tpu as pltpu


def _critic_kernel(s_ref, a_ref, w1_ref, b1_ref, w2h_ref, w2a_ref, b2_ref,
                   w3_ref, b3_ref, o_ref, *, compute_dtype):
    cd = compute_dtype
    s = s_ref[...].astype(cd)                           # [TILE_B, S]
    a = a_ref[...].astype(cd)                           # [TILE_B, A]

    # h1^T = W1^T @ state^T  -> [H1, TILE_B] (batch on lanes, f32 accumulate).
    h1t = jax.lax.dot_general(
        w1_ref[...], s,
        dimension_numbers=(((0,), (1,)), ((), ())),
        preferred_element_type=jnp.float32)
    h1t = jnp.maximum(h1t + b1_ref[...], 0.0).astype(cd)   # bias+relu, lane-dense

    # h2^T = W2_h^T @ h1^T + W2_a^T @ action^T  (== fc2 on concat([h1, action]))
    h2t = (jax.lax.dot_general(
               w2h_ref[...], h1t,
               dimension_numbers=(((0,), (0,)), ((), ())),
               preferred_element_type=jnp.float32)
           + jax.lax.dot_general(
               w2a_ref[...], a,
               dimension_numbers=(((0,), (1,)), ((), ())),
               preferred_element_type=jnp.float32))
    h2t = jnp.maximum(h2t + b2_ref[...], 0.0).astype(cd)   # [H2, TILE_B]

    # out^T = W3^T @ h2^T  -> [1, TILE_B], lane-dense writeback.
    out_t = jax.lax.dot_general(
        w3_ref[...], h2t,
        dimension_numbers=(((0,), (0,)), ((), ())),
        preferred_element_type=jnp.float32)
    o_ref[...] = out_t + b3_ref[...]                        # [1, TILE_B] f32


def _round_up(x, m):
    return ((x + m - 1) // m) * m


def critic_forward(state, action, params, *, compute_dtype=jnp.float32,
                   max_tile_b=2048):
    """state: [B, state_size], action: [B, action_size] -> [B, 1] f32."""
    B, state_size = state.shape
    action_size = action.shape[1]

    w1 = params["w1"]
    H1 = w1.shape[1]
    H2 = params["w2"].shape[1]

    cd = compute_dtype
    # Weights are tiny; cast once in the wrapper and keep them VMEM-resident.
    w1_c = w1.astype(cd)                                   # [S, H1]
    w2_h = params["w2"][:H1, :].astype(cd)                 # [H1, H2]
    w2_a = params["w2"][H1:, :].astype(cd)                 # [A, H2]
    w3_c = params["w3"].astype(cd)                         # [H2, 1]
    b1r = params["b1"].reshape(H1, 1).astype(jnp.float32)
    b2r = params["b2"].reshape(H2, 1).astype(jnp.float32)
    b3r = params["b3"].reshape(1, 1).astype(jnp.float32)

    # Batch tiling: multiples of 128 (lane-dense output blocks), big enough to
    # amortize per-grid-step overhead, capped at ~B/2 so large batches always
    # give >= 2 parallel tiles (both v7x TensorCores get work).
    half = _round_up(max(pl.cdiv(B, 2), 1), 128)
    tile_b = max(128, min(max_tile_b, half))
    n_tiles = pl.cdiv(B, tile_b)                           # ragged last tile OK

    in_bytes = state.dtype.itemsize
    flops = 2 * B * (state_size * H1 + H1 * H2 + action_size * H2 + H2)
    bytes_accessed = (B * (state_size + action_size) * in_bytes + B * 4
                      + 4 * (state_size * H1 + H1 * H2 + action_size * H2
                             + H1 + H2 + H2 + 1))
    cost = pl.CostEstimate(flops=int(flops), transcendentals=0,
                           bytes_accessed=int(bytes_accessed))

    const = lambda i: (0, 0)                               # resident weights
    row = lambda i: (i, 0)                                 # activation tiles

    out = pl.pallas_call(
        functools.partial(_critic_kernel, compute_dtype=cd),
        out_shape=jax.ShapeDtypeStruct((1, B), jnp.float32),
        grid=(n_tiles,),
        in_specs=[
            pl.BlockSpec((tile_b, state_size), row),       # state tile (f32)
            pl.BlockSpec((tile_b, action_size), row),      # action tile (f32)
            pl.BlockSpec((state_size, H1), const),         # W1
            pl.BlockSpec((H1, 1), const),                  # b1 (column)
            pl.BlockSpec((H1, H2), const),                 # W2[:H1]
            pl.BlockSpec((action_size, H2), const),        # W2[H1:]
            pl.BlockSpec((H2, 1), const),                  # b2 (column)
            pl.BlockSpec((H2, 1), const),                  # W3
            pl.BlockSpec((1, 1), const),                   # b3
        ],
        out_specs=pl.BlockSpec((1, tile_b), lambda i: (0, i)),
        compiler_params=pltpu.CompilerParams(
            dimension_semantics=("parallel",)),
        cost_estimate=cost,
    )(state, action, w1_c, b1r, w2_h, w2_a, b2r, w3_c, b3r)

    return out[0, :].reshape(B, 1)


def init_critic_params(state_size, action_size, seed=0):
    """PyTorch-Linear-style init: U(-1/sqrt(fan_in), 1/sqrt(fan_in))."""
    h1, h2 = 32, 32
    key = jax.random.PRNGKey(seed)
    ks = jax.random.split(key, 6)

    def lin(kw, kb, fan_in, fan_out):
        bound = 1.0 / jnp.sqrt(jnp.float32(fan_in))
        w = jax.random.uniform(kw, (fan_in, fan_out), jnp.float32, -bound, bound)
        b = jax.random.uniform(kb, (fan_out,), jnp.float32, -bound, bound)
        return w, b

    w1, b1 = lin(ks[0], ks[1], state_size, h1)
    w2, b2 = lin(ks[2], ks[3], h1 + action_size, h2)
    w3, b3 = lin(ks[4], ks[5], h2, 1)
    return dict(w1=w1, b1=b1, w2=w2, b2=b2, w3=w3, b3=b3)


def critic_reference(state, action, params):
    """Pure-JAX f32 reference matching the PyTorch forward."""
    h = jax.nn.relu(state @ params["w1"] + params["b1"])
    x = jnp.concatenate([h, action], axis=1)
    h = jax.nn.relu(x @ params["w2"] + params["b2"])
    return h @ params["w3"] + params["b3"]


if __name__ == "__main__":
    batch = 2
    state_size = 16
    action_size = 4

    key = jax.random.PRNGKey(0)
    k_s, k_a, k_s2, k_a2 = jax.random.split(key, 4)
    state = jax.random.normal(k_s, (batch, state_size), jnp.float32)
    action = jax.random.normal(k_a, (batch, action_size), jnp.float32)

    params = init_critic_params(state_size, action_size, seed=0)
    ref = critic_reference(state, action, params)

    # Default f32 path: exact math (f32 inputs, f32 MXU accumulation).
    out_f32 = jax.block_until_ready(critic_forward(state, action, params))
    assert out_f32.shape == (batch, 1), out_f32.shape
    assert jnp.allclose(out_f32, ref, atol=1e-5, rtol=1e-5), (out_f32, ref)

    # bf16 compute path (in-kernel cast, f32 accumulation), looser tolerance.
    out_bf16 = jax.block_until_ready(
        critic_forward(state, action, params, compute_dtype=jnp.bfloat16))
    assert out_bf16.shape == (batch, 1), out_bf16.shape
    assert jnp.allclose(out_bf16, ref, atol=5e-2, rtol=5e-2), (out_bf16, ref)

    # Larger, non-tile-multiple batch: exercises multi-tile grid + ragged tail.
    big_b = 1000
    state_b = jax.random.normal(k_s2, (big_b, state_size), jnp.float32)
    action_b = jax.random.normal(k_a2, (big_b, action_size), jnp.float32)
    ref_b = critic_reference(state_b, action_b, params)
    out_b = jax.block_until_ready(critic_forward(state_b, action_b, params))
    assert out_b.shape == (big_b, 1), out_b.shape
    assert jnp.allclose(out_b, ref_b, atol=1e-4, rtol=1e-4)

    print("KERNEL_OK")
</pallas_src>

<mosaic_0001>
module attributes {stable_mosaic.version = 11 : i64} {
  func.func @_critic_kernel(%arg0: i32, %arg1: memref<128x16xf32, #tpu.memory_space<vmem>>, %arg2: memref<128x4xf32, #tpu.memory_space<vmem>>, %arg3: memref<16x32xf32, #tpu.memory_space<vmem>>, %arg4: memref<32x1xf32, #tpu.memory_space<vmem>>, %arg5: memref<32x32xf32, #tpu.memory_space<vmem>>, %arg6: memref<4x32xf32, #tpu.memory_space<vmem>>, %arg7: memref<32x1xf32, #tpu.memory_space<vmem>>, %arg8: memref<32x1xf32, #tpu.memory_space<vmem>>, %arg9: memref<1x1xf32, #tpu.memory_space<vmem>>, %arg10: memref<1x128xf32, #tpu.memory_space<vmem>>) attributes {dimension_semantics = [#tpu.dimension_semantics<parallel>], iteration_bounds = array<i64: 1>, scalar_prefetch = 0 : i64, scratch_operands = 0 : i64, tpu.core_type = #tpu.core_type<tc>, window_params = [{transform_indices = @transform_0, window_bounds = array<i64: 128, 16>}, {transform_indices = @transform_1, window_bounds = array<i64: 128, 4>}, {pipeline_mode = #tpu.pipeline_mode<synchronous>, transform_indices = @transform_2, window_bounds = array<i64: 16, 32>}, {pipeline_mode = #tpu.pipeline_mode<synchronous>, transform_indices = @transform_3, window_bounds = array<i64: 32, 1>}, {pipeline_mode = #tpu.pipeline_mode<synchronous>, transform_indices = @transform_4, window_bounds = array<i64: 32, 32>}, {pipeline_mode = #tpu.pipeline_mode<synchronous>, transform_indices = @transform_5, window_bounds = array<i64: 4, 32>}, {pipeline_mode = #tpu.pipeline_mode<synchronous>, transform_indices = @transform_6, window_bounds = array<i64: 32, 1>}, {pipeline_mode = #tpu.pipeline_mode<synchronous>, transform_indices = @transform_7, window_bounds = array<i64: 32, 1>}, {pipeline_mode = #tpu.pipeline_mode<synchronous>, transform_indices = @transform_8, window_bounds = array<i64: 1, 1>}, {transform_indices = @transform_9, window_bounds = array<i64: 1, 128>}]} {
    %c0 = arith.constant 0 : index
    %c0_0 = arith.constant 0 : index
    %0 = vector.load %arg1[%c0, %c0_0] : memref<128x16xf32, #tpu.memory_space<vmem>>, vector<128x16xf32>
    %c0_1 = arith.constant 0 : index
    %c0_2 = arith.constant 0 : index
    %1 = vector.load %arg2[%c0_1, %c0_2] : memref<128x4xf32, #tpu.memory_space<vmem>>, vector<128x4xf32>
    %c0_3 = arith.constant 0 : index
    %c0_4 = arith.constant 0 : index
    %2 = vector.load %arg3[%c0_3, %c0_4] : memref<16x32xf32, #tpu.memory_space<vmem>>, vector<16x32xf32>
    %cst = arith.constant dense<0.000000e+00> : vector<32x128xf32>
    %3 = tpu.matmul %2, %0, %cst {dimension_numbers = #tpu.dot_dimension_numbers<[0], [1], [1], [0], [0, 1, 1, 0], [], []>} : vector<16x32xf32>, vector<128x16xf32>, vector<32x128xf32> -> vector<32x128xf32>
    %c0_5 = arith.constant 0 : index
    %c0_6 = arith.constant 0 : index
    %4 = vector.load %arg4[%c0_5, %c0_6] : memref<32x1xf32, #tpu.memory_space<vmem>>, vector<32x1xf32>
    %5 = vector.broadcast %4 : vector<32x1xf32> to vector<32x128xf32>
    %6 = arith.addf %3, %5 : vector<32x128xf32>
    %cst_7 = arith.constant 0.000000e+00 : f32
    %7 = vector.broadcast %cst_7 : f32 to vector<32x128xf32>
    %8 = arith.maximumf %6, %7 : vector<32x128xf32>
    %c0_8 = arith.constant 0 : index
    %c0_9 = arith.constant 0 : index
    %9 = vector.load %arg5[%c0_8, %c0_9] : memref<32x32xf32, #tpu.memory_space<vmem>>, vector<32x32xf32>
    %cst_10 = arith.constant dense<0.000000e+00> : vector<32x128xf32>
    %10 = tpu.matmul %9, %8, %cst_10 {dimension_numbers = #tpu.dot_dimension_numbers<[0], [0], [1], [1], [0, 1, 1, 1], [], []>} : vector<32x32xf32>, vector<32x128xf32>, vector<32x128xf32> -> vector<32x128xf32>
    %c0_11 = arith.constant 0 : index
    %c0_12 = arith.constant 0 : index
    %11 = vector.load %arg6[%c0_11, %c0_12] : memref<4x32xf32, #tpu.memory_space<vmem>>, vector<4x32xf32>
    %cst_13 = arith.constant dense<0.000000e+00> : vector<32x128xf32>
    %12 = tpu.matmul %11, %1, %cst_13 {dimension_numbers = #tpu.dot_dimension_numbers<[0], [1], [1], [0], [0, 1, 1, 0], [], []>} : vector<4x32xf32>, vector<128x4xf32>, vector<32x128xf32> -> vector<32x128xf32>
    %13 = arith.addf %10, %12 : vector<32x128xf32>
    %c0_14 = arith.constant 0 : index
    %c0_15 = arith.constant 0 : index
    %14 = vector.load %arg7[%c0_14, %c0_15] : memref<32x1xf32, #tpu.memory_space<vmem>>, vector<32x1xf32>
    %15 = vector.broadcast %14 : vector<32x1xf32> to vector<32x128xf32>
    %16 = arith.addf %13, %15 : vector<32x128xf32>
    %cst_16 = arith.constant 0.000000e+00 : f32
    %17 = vector.broadcast %cst_16 : f32 to vector<32x128xf32>
    %18 = arith.maximumf %16, %17 : vector<32x128xf32>
    %c0_17 = arith.constant 0 : index
    %c0_18 = arith.constant 0 : index
    %19 = vector.load %arg8[%c0_17, %c0_18] : memref<32x1xf32, #tpu.memory_space<vmem>>, vector<32x1xf32>
    %cst_19 = arith.constant dense<0.000000e+00> : vector<1x128xf32>
    %20 = tpu.matmul %19, %18, %cst_19 {dimension_numbers = #tpu.dot_dimension_numbers<[0], [0], [1], [1], [0, 1, 1, 1], [], []>} : vector<32x1xf32>, vector<32x128xf32>, vector<1x128xf32> -> vector<1x128xf32>
    %c0_20 = arith.constant 0 : index
    %c0_21 = arith.constant 0 : index
    %21 = vector.load %arg9[%c0_20, %c0_21] : memref<1x1xf32, #tpu.memory_space<vmem>>, vector<1x1xf32>
    %22 = vector.broadcast %21 : vector<1x1xf32> to vector<1x128xf32>
    %23 = arith.addf %20, %22 : vector<1x128xf32>
    %c0_22 = arith.constant 0 : index
    %c0_23 = arith.constant 0 : index
    %24 = vector.load %arg10[%c0_22, %c0_23] : memref<1x128xf32, #tpu.memory_space<vmem>>, vector<1x128xf32>
    tpu.vector_store %arg10[%c0_22, %c0_23], %23 {strides = array<i32>} : memref<1x128xf32, #tpu.memory_space<vmem>>, vector<1x128xf32>,
    return
  }
  func.func @transform_0(%arg0: i32) -> (i32, i32) {
    %c0_i32 = arith.constant 0 : i32
    %c0_i32_0 = arith.constant 0 : i32
    return %arg0, %c0_i32 : i32, i32
  }
  func.func @transform_1(%arg0: i32) -> (i32, i32) {
    %c0_i32 = arith.constant 0 : i32
    %c0_i32_0 = arith.constant 0 : i32
    return %arg0, %c0_i32 : i32, i32
  }
  func.func @transform_2(%arg0: i32) -> (i32, i32) {
    %c0_i32 = arith.constant 0 : i32
    %c0_i32_0 = arith.constant 0 : i32
    %c0_i32_1 = arith.constant 0 : i32
    return %c0_i32, %c0_i32_0 : i32, i32
  }
  func.func @transform_3(%arg0: i32) -> (i32, i32) {
    %c0_i32 = arith.constant 0 : i32
    %c0_i32_0 = arith.constant 0 : i32
    %c0_i32_1 = arith.constant 0 : i32
    return %c0_i32, %c0_i32_0 : i32, i32
  }
  func.func @transform_4(%arg0: i32) -> (i32, i32) {
    %c0_i32 = arith.constant 0 : i32
    %c0_i32_0 = arith.constant 0 : i32
    %c0_i32_1 = arith.constant 0 : i32
    return %c0_i32, %c0_i32_0 : i32, i32
  }
  func.func @transform_5(%arg0: i32) -> (i32, i32) {
    %c0_i32 = arith.constant 0 : i32
    %c0_i32_0 = arith.constant 0 : i32
    %c0_i32_1 = arith.constant 0 : i32
    return %c0_i32, %c0_i32_0 : i32, i32
  }
  func.func @transform_6(%arg0: i32) -> (i32, i32) {
    %c0_i32 = arith.constant 0 : i32
    %c0_i32_0 = arith.constant 0 : i32
    %c0_i32_1 = arith.constant 0 : i32
    return %c0_i32, %c0_i32_0 : i32, i32
  }
  func.func @transform_7(%arg0: i32) -> (i32, i32) {
    %c0_i32 = arith.constant 0 : i32
    %c0_i32_0 = arith.constant 0 : i32
    %c0_i32_1 = arith.constant 0 : i32
    return %c0_i32, %c0_i32_0 : i32, i32
  }
  func.func @transform_8(%arg0: i32) -> (i32, i32) {
    %c0_i32 = arith.constant 0 : i32
    %c0_i32_0 = arith.constant 0 : i32
    %c0_i32_1 = arith.constant 0 : i32
    return %c0_i32, %c0_i32_0 : i32, i32
  }
  func.func @transform_9(%arg0: i32) -> (i32, i32) {
    %c0_i32 = arith.constant 0 : i32
    %c0_i32_0 = arith.constant 0 : i32
    return %c0_i32, %arg0 : i32, i32
  }
}

</mosaic_0001>

<llo_original>
// kernel: tpu_custom_call.1
$region0: #{tpu_custom_call.1}
  #allocation0 [shape = 'u32[]', space=smem, size = 0x4, offset = 0x4, fixed_abs, tag = 'smem constant byte address 0x4 - core index']
  #allocation1 [shape = 'u32[72,128]{1,0:T(1,128)}', space=vmem, size = 0x9000, scoped, tag = 'internal scratch']
  #allocation2 [shape = 'f32[1,1]{1,0:T(1,128)S(1)}', space=vmem, size = 0x200, scoped, tag = 'scoped memory for tpu_custom_call.1']
  %s0 = inlined_call_operand.vmem [shape: f32[2,16], index: 0, kind: input, shape index: {}]
  %s1 = inlined_call_operand.vmem [shape: f32[2,4], index: 1, kind: input, shape index: {}]
  %s2 = inlined_call_operand.vmem [shape: f32[16,32], index: 2, kind: input, shape index: {}]
  %s3 = inlined_call_operand.vmem [shape: f32[32,1], index: 3, kind: input, shape index: {}]
  %s4 = inlined_call_operand.vmem [shape: f32[32,32], index: 4, kind: input, shape index: {}]
  %s5 = inlined_call_operand.vmem [shape: f32[4,32], index: 5, kind: input, shape index: {}]
  %s6 = inlined_call_operand.vmem [shape: f32[32,1], index: 6, kind: input, shape index: {}]
  %s7 = inlined_call_operand.vmem [shape: f32[32,1], index: 7, kind: input, shape index: {}]
  %s8 = inlined_call_operand.<no memory space> [shape: f32[1,1], index: 8, kind: input, shape index: {}]
  %s9 = inlined_call_operand.hbm [shape: f32[1,2], index: 9, kind: output, shape index: {}]
  %s10 = sld [smem:[#allocation0]]
  $region46: #{tpu_custom_call.1} parent=0
    _
  %s12 = ssub.s32 1, %s10
  %s13 = scalar_select 0, %s12, %s10
  %v14 = vstv %s8
  %15 = vst [vmem:[#allocation2] sm:$0x1] %v14
  $region1: #{tpu_custom_call.1} parent=0
    #allocation3 [shape = 'u8[512]{0}', space=vmem, size = 0x400, scoped, tag = 'output window, operand 0, single buffered']
    #allocation4 [shape = 's32[1]{0}', space=sflag, size = 0x4, scoped, tag = 'scoped memory for tpu_custom_call.1']
    %16 = vsyncpa [#allocation4], 0
    // Predicated region
    $region2: #{tpu_custom_call.1} parent=1 // pred_check
      _
    $region3: #{tpu_custom_call.1} parent=1 // pred_check_branch
      %18 = sbr.rel (0) target = $region5
    $region4: #{tpu_custom_call.1} parent=1 // pred_region
      _
    $region5: #{tpu_custom_call.1} parent=1 // pred_fallthru
      _
    // Predicated region
    $region6: #{tpu_custom_call.1} parent=1 // pred_check
      _
    $region7: #{tpu_custom_call.1} parent=1 // pred_check_branch
      %20 = sbr.rel (0) target = $region9
    $region8: #{tpu_custom_call.1} parent=1 // pred_region
      _
    $region9: #{tpu_custom_call.1} parent=1 // pred_fallthru
      _
    // Predicated region
    $region10: #{tpu_custom_call.1} parent=1 // pred_check
      _
    $region11: #{tpu_custom_call.1} parent=1 // pred_check_branch
      %22 = sbr.rel (0) target = $region13
    $region12: #{tpu_custom_call.1} parent=1 // pred_region
      _
    $region13: #{tpu_custom_call.1} parent=1 // pred_fallthru
      _
    // Predicated region
    $region14: #{tpu_custom_call.1} parent=1 // pred_check
      _
    $region15: #{tpu_custom_call.1} parent=1 // pred_check_branch
      %24 = sbr.rel (0) target = $region17
    $region16: #{tpu_custom_call.1} parent=1 // pred_region
      _
    $region17: #{tpu_custom_call.1} parent=1 // pred_fallthru
      _
    // Predicated region
    $region18: #{tpu_custom_call.1} parent=1 // pred_check
      _
    $region19: #{tpu_custom_call.1} parent=1 // pred_check_branch
      %26 = sbr.rel (0) target = $region21
    $region20: #{tpu_custom_call.1} parent=1 // pred_region
      _
    $region21: #{tpu_custom_call.1} parent=1 // pred_fallthru
      _
    // Predicated region
    $region22: #{tpu_custom_call.1} parent=1 // pred_check
      _
    $region23: #{tpu_custom_call.1} parent=1 // pred_check_branch
      %28 = sbr.rel (0) target = $region25
    $region24: #{tpu_custom_call.1} parent=1 // pred_region
      _
    $region25: #{tpu_custom_call.1} parent=1 // pred_fallthru
      _
    // Predicated region
    $region26: #{tpu_custom_call.1} parent=1 // pred_check
      _
    $region27: #{tpu_custom_call.1} parent=1 // pred_check_branch
      %30 = sbr.rel (0) target = $region29
    $region28: #{tpu_custom_call.1} parent=1 // pred_region
      _
    $region29: #{tpu_custom_call.1} parent=1 // pred_fallthru
      _
    // Predicated region
    $region30: #{tpu_custom_call.1} parent=1 // pred_check
      _
    $region31: #{tpu_custom_call.1} parent=1 // pred_check_branch
      %32 = sbr.rel (0) target = $region33
    $region32: #{tpu_custom_call.1} parent=1 // pred_region
      _
    $region33: #{tpu_custom_call.1} parent=1 // pred_fallthru
      _
    // Predicated region
    $region34: #{tpu_custom_call.1} parent=1 // pred_check
      _
    $region35: #{tpu_custom_call.1} parent=1 // pred_check_branch
      %34 = sbr.rel (0) target = $region37
    $region36: #{tpu_custom_call.1} parent=1 // pred_region
      _
    $region37: #{tpu_custom_call.1} parent=1 // pred_fallthru
      _
    %v35 = vld [vmem:[%s0] sm:$0xff]
    %v36 = vld [vmem:[%s0 + $0x8] sm:$0xff]
    %v37 = vld [vmem:[%s0 + $0x10] sm:$0xff]
    %v38 = vld [vmem:[%s0 + $0x18] sm:$0xff]
    %v39 = vld [vmem:[%s0 + $0x20] sm:$0xff]
    %v40 = vld [vmem:[%s0 + $0x28] sm:$0xff]
    %v41 = vld [vmem:[%s0 + $0x30] sm:$0xff]
    %v42 = vld [vmem:[%s0 + $0x38] sm:$0xff]
    %v43 = vld [vmem:[%s0 + $0x40] sm:$0xff]
    %v44 = vld [vmem:[%s0 + $0x48] sm:$0xff]
    %v45 = vld [vmem:[%s0 + $0x50] sm:$0xff]
    %v46 = vld [vmem:[%s0 + $0x58] sm:$0xff]
    %v47 = vld [vmem:[%s0 + $0x60] sm:$0xff]
    %v48 = vld [vmem:[%s0 + $0x68] sm:$0xff]
    %v49 = vld [vmem:[%s0 + $0x70] sm:$0xff]
    %v50 = vld [vmem:[%s0 + $0x78] sm:$0xff]
    %v51 = vld [vmem:[%s1] sm:$0xff]
    %v52 = vld [vmem:[%s1 + $0x8] sm:$0xff]
    %v53 = vld [vmem:[%s1 + $0x10] sm:$0xff]
    %v54 = vld [vmem:[%s1 + $0x18] sm:$0xff]
    %v55 = vld [vmem:[%s1 + $0x20] sm:$0xff]
    %v56 = vld [vmem:[%s1 + $0x28] sm:$0xff]
    %v57 = vld [vmem:[%s1 + $0x30] sm:$0xff]
    %v58 = vld [vmem:[%s1 + $0x38] sm:$0xff]
    %v59 = vld [vmem:[%s1 + $0x40] sm:$0xff]
    %v60 = vld [vmem:[%s1 + $0x48] sm:$0xff]
    %v61 = vld [vmem:[%s1 + $0x50] sm:$0xff]
    %v62 = vld [vmem:[%s1 + $0x58] sm:$0xff]
    %v63 = vld [vmem:[%s1 + $0x60] sm:$0xff]
    %v64 = vld [vmem:[%s1 + $0x68] sm:$0xff]
    %v65 = vld [vmem:[%s1 + $0x70] sm:$0xff]
    %v66 = vld [vmem:[%s1 + $0x78] sm:$0xff]
    %v67 = vld [vmem:[%s2] sm:$0xff]
    %v68 = vld [vmem:[%s2 + $0x8] sm:$0xff]
    %v69 = vld [vmem:[%s3] sm:$0xff]
    %v70 = vld [vmem:[%s3 + $0x8] sm:$0xff]
    %v71 = vld [vmem:[%s3 + $0x10] sm:$0xff]
    %v72 = vld [vmem:[%s3 + $0x18] sm:$0xff]
    %74 = vset.pattern.permute.xlu0 0
    %75 = vperm.xlu0 %74, %v69
    %v76 = vpop.permute.xlu0 %75
    %79 = vset.pattern.permute.xlu0 0
    %80 = vperm.xlu0 %79, %v70
    %v81 = vpop.permute.xlu0 %80
    %84 = vset.pattern.permute.xlu0 0
    %85 = vperm.xlu0 %84, %v71
    %v86 = vpop.permute.xlu0 %85
    %89 = vset.pattern.permute.xlu0 0
    %90 = vperm.xlu0 %89, %v72
    %v91 = vpop.permute.xlu0 %90
    %93 = vxpose.xlu0.b32.start [1/16] %v67, 128
    %94 = vxpose.xlu0.b32.cont [2/16] %v68, 128
    %95 = vxpose.xlu0.b32.cont [3/16] 0.0, 128
    %96 = vxpose.xlu0.b32.cont [4/16] 0.0, 128
    %97 = vxpose.xlu0.b32.cont [5/16] 0.0, 128
    %98 = vxpose.xlu0.b32.cont [6/16] 0.0, 128
    %99 = vxpose.xlu0.b32.cont [7/16] 0.0, 128
    %100 = vxpose.xlu0.b32.cont [8/16] 0.0, 128
    %101 = vxpose.xlu0.b32.cont [9/16] 0.0, 128
    %102 = vxpose.xlu0.b32.cont [10/16] 0.0, 128
    %103 = vxpose.xlu0.b32.cont [11/16] 0.0, 128
    %104 = vxpose.xlu0.b32.cont [12/16] 0.0, 128
    %105 = vxpose.xlu0.b32.cont [13/16] 0.0, 128
    %106 = vxpose.xlu0.b32.cont [14/16] 0.0, 128
    %107 = vxpose.xlu0.b32.cont [15/16] 0.0, 128
    %108 = vxpose.xlu0.b32.end [16/16] 0.0, 128
    %v109 = vpop.trf.xlu0
    %v110 = vpop.trf.xlu0
    %v111 = vpop.trf.xlu0
    %v112 = vpop.trf.xlu0
    %v113 = vpop.trf.xlu0
    %v114 = vpop.trf.xlu0
    %v115 = vpop.trf.xlu0
    %v116 = vpop.trf.xlu0
    %v117 = vpop.trf.xlu0
    %v118 = vpop.trf.xlu0
    %v119 = vpop.trf.xlu0
    %v120 = vpop.trf.xlu0
    %v121 = vpop.trf.xlu0
    %v122 = vpop.trf.xlu0
    %v123 = vpop.trf.xlu0
    %v124 = vpop.trf.xlu0
    %vm125 = vcmask 130048
    %v127 = vsel %vm125, %v109, 0
    %v130 = vsel %vm125, %v110, 0
    %v133 = vsel %vm125, %v111, 0
    %v136 = vsel %vm125, %v112, 0
    %v139 = vsel %vm125, %v35, 0
    %v142 = vsel %vm125, %v36, 0
    %v145 = vsel %vm125, %v37, 0
    %v148 = vsel %vm125, %v38, 0
    %v151 = vsel %vm125, %v39, 0
    %v154 = vsel %vm125, %v40, 0
    %v157 = vsel %vm125, %v41, 0
    %v160 = vsel %vm125, %v42, 0
    %v163 = vsel %vm125, %v43, 0
    %v166 = vsel %vm125, %v44, 0
    %v169 = vsel %vm125, %v45, 0
    %v172 = vsel %vm125, %v46, 0
    %v175 = vsel %vm125, %v47, 0
    %v178 = vsel %vm125, %v48, 0
    %v181 = vsel %vm125, %v49, 0
    %v184 = vsel %vm125, %v50, 0
    %186 = vmatpush.xpose.msra.mxu0 %v184
    %187 = vmatpush.xpose.msra.mxu0 %v181
    %188 = vmatpush.xpose.msra.mxu0 %v178
    %189 = vmatpush.xpose.msra.mxu0 %v175
    %190 = vmatpush.xpose.msra.mxu0 %v172
    %191 = vmatpush.xpose.msra.mxu0 %v169
    %192 = vmatpush.xpose.msra.mxu0 %v166
    %193 = vmatpush.xpose.msra.mxu0 %v163
    %194 = vmatpush.xpose.msra.mxu0 %v160
    %195 = vmatpush.xpose.msra.mxu0 %v157
    %196 = vmatpush.xpose.msra.mxu0 %v154
    %197 = vmatpush.xpose.msra.mxu0 %v151
    %198 = vmatpush.xpose.msra.mxu0 %v148
    %199 = vmatpush.xpose.msra.mxu0 %v145
    %200 = vmatpush.xpose.msra.mxu0 %v142
    %201 = vmatpush.xpose.msra.mxu0 %v139
    %202 = vmatmul.f32.gmra.mxu0 %v127
    %v203 = vpop.f32.mrf.mxu0
    %v204 = vadd.f32 %v76, %v203
    %205 = vmatmul.f32.gmra.mxu0 %v130
    %v206 = vpop.f32.mrf.mxu0
    %v207 = vadd.f32 %v81, %v206
    %208 = vmatmul.f32.gmra.mxu0 %v133
    %v209 = vpop.f32.mrf.mxu0
    %v210 = vadd.f32 %v86, %v209
    %211 = vmatmul.f32.gmra.mxu0 %v136
    %v212 = vpop.f32.mrf.mxu0
    %v213 = vadd.f32 %v91, %v212
    %214 = vdwg.mxu0
    %v215 = vmax.f32 %v204, 0.0
    %v216 = vmax.f32 %v207, 0.0
    %v217 = vmax.f32 %v210, 0.0
    %v218 = vmax.f32 %v213, 0.0
    %v219 = vld [vmem:[%s4] sm:$0xff]
    %v220 = vld [vmem:[%s4 + $0x8] sm:$0xff]
    %v221 = vld [vmem:[%s4 + $0x10] sm:$0xff]
    %v222 = vld [vmem:[%s4 + $0x18] sm:$0xff]
    %v223 = vld [vmem:[%s5] sm:$0xf]
    %224 = vxpose.xlu0.b32.start [1/16] %v223, 128
    %225 = vxpose.xlu0.b32.cont [2/16] 0.0, 128
    %226 = vxpose.xlu0.b32.cont [3/16] 0.0, 128
    %227 = vxpose.xlu0.b32.cont [4/16] 0.0, 128
    %228 = vxpose.xlu0.b32.cont [5/16] 0.0, 128
    %229 = vxpose.xlu0.b32.cont [6/16] 0.0, 128
    %230 = vxpose.xlu0.b32.cont [7/16] 0.0, 128
    %231 = vxpose.xlu0.b32.cont [8/16] 0.0, 128
    %232 = vxpose.xlu0.b32.cont [9/16] 0.0, 128
    %233 = vxpose.xlu0.b32.cont [10/16] 0.0, 128
    %234 = vxpose.xlu0.b32.cont [11/16] 0.0, 128
    %235 = vxpose.xlu0.b32.cont [12/16] 0.0, 128
    %236 = vxpose.xlu0.b32.cont [13/16] 0.0, 128
    %237 = vxpose.xlu0.b32.cont [14/16] 0.0, 128
    %238 = vxpose.xlu0.b32.cont [15/16] 0.0, 128
    %239 = vxpose.xlu0.b32.end [16/16] 0.0, 128
    %v240 = vpop.trf.xlu0
    %v241 = vpop.trf.xlu0
    %v242 = vpop.trf.xlu0
    %v243 = vpop.trf.xlu0
    %v244 = vpop.trf.xlu0
    %v245 = vpop.trf.xlu0
    %v246 = vpop.trf.xlu0
    %v247 = vpop.trf.xlu0
    %v248 = vpop.trf.xlu0
    %v249 = vpop.trf.xlu0
    %v250 = vpop.trf.xlu0
    %v251 = vpop.trf.xlu0
    %v252 = vpop.trf.xlu0
    %v253 = vpop.trf.xlu0
    %v254 = vpop.trf.xlu0
    %v255 = vpop.trf.xlu0
    %vm256 = vcmask 31744
    %v258 = vsel %vm256, %v240, 0
    %v261 = vsel %vm256, %v241, 0
    %v264 = vsel %vm256, %v242, 0
    %v267 = vsel %vm256, %v243, 0
    %v270 = vsel %vm256, %v51, 0
    %v273 = vsel %vm256, %v52, 0
    %v276 = vsel %vm256, %v53, 0
    %v279 = vsel %vm256, %v54, 0
    %v282 = vsel %vm256, %v55, 0
    %v285 = vsel %vm256, %v56, 0
    %v288 = vsel %vm256, %v57, 0
    %v291 = vsel %vm256, %v58, 0
    %v294 = vsel %vm256, %v59, 0
    %v297 = vsel %vm256, %v60, 0
    %v300 = vsel %vm256, %v61, 0
    %v303 = vsel %vm256, %v62, 0
    %v306 = vsel %vm256, %v63, 0
    %v309 = vsel %vm256, %v64, 0
    %v312 = vsel %vm256, %v65, 0
    %v315 = vsel %vm256, %v66, 0
    %317 = vmatpush.xpose.msra.mxu0 %v315
    %318 = vmatpush.xpose.msra.mxu0 %v312
    %319 = vmatpush.xpose.msra.mxu0 %v309
    %320 = vmatpush.xpose.msra.mxu0 %v306
    %321 = vmatpush.xpose.msra.mxu0 %v303
    %322 = vmatpush.xpose.msra.mxu0 %v300
    %323 = vmatpush.xpose.msra.mxu0 %v297
    %324 = vmatpush.xpose.msra.mxu0 %v294
    %325 = vmatpush.xpose.msra.mxu0 %v291
    %326 = vmatpush.xpose.msra.mxu0 %v288
    %327 = vmatpush.xpose.msra.mxu0 %v285
    %328 = vmatpush.xpose.msra.mxu0 %v282
    %329 = vmatpush.xpose.msra.mxu0 %v279
    %330 = vmatpush.xpose.msra.mxu0 %v276
    %331 = vmatpush.xpose.msra.mxu0 %v273
    %332 = vmatpush.xpose.msra.mxu0 %v270
    %333 = vmatmul.f32.gmra.mxu0 %v258
    %v334 = vpop.f32.mrf.mxu0
    %v335 = vadd.f32 0.0, %v334
    %336 = vmatmul.f32.gmra.mxu0 %v261
    %v337 = vpop.f32.mrf.mxu0
    %v338 = vadd.f32 0.0, %v337
    %339 = vmatmul.f32.gmra.mxu0 %v264
    %v340 = vpop.f32.mrf.mxu0
    %v341 = vadd.f32 0.0, %v340
    %342 = vmatmul.f32.gmra.mxu0 %v267
    %v343 = vpop.f32.mrf.mxu0
    %v344 = vadd.f32 0.0, %v343
    %345 = vdwg.mxu0
    %346 = vxpose.xlu0.b32.start [1/16] %v219, 128
    %347 = vxpose.xlu0.b32.cont [2/16] %v220, 128
    %348 = vxpose.xlu0.b32.cont [3/16] %v221, 128
    %349 = vxpose.xlu0.b32.cont [4/16] %v222, 128
    %350 = vxpose.xlu0.b32.cont [5/16] 0.0, 128
    %351 = vxpose.xlu0.b32.cont [6/16] 0.0, 128
    %352 = vxpose.xlu0.b32.cont [7/16] 0.0, 128
    %353 = vxpose.xlu0.b32.cont [8/16] 0.0, 128
    %354 = vxpose.xlu0.b32.cont [9/16] 0.0, 128
    %355 = vxpose.xlu0.b32.cont [10/16] 0.0, 128
    %356 = vxpose.xlu0.b32.cont [11/16] 0.0, 128
    %357 = vxpose.xlu0.b32.cont [12/16] 0.0, 128
    %358 = vxpose.xlu0.b32.cont [13/16] 0.0, 128
    %359 = vxpose.xlu0.b32.cont [14/16] 0.0, 128
    %360 = vxpose.xlu0.b32.cont [15/16] 0.0, 128
    %361 = vxpose.xlu0.b32.end [16/16] 0.0, 128
    %v362 = vpop.trf.xlu0
    %v363 = vpop.trf.xlu0
    %v364 = vpop.trf.xlu0
    %v365 = vpop.trf.xlu0
    %v366 = vpop.trf.xlu0
    %v367 = vpop.trf.xlu0
    %v368 = vpop.trf.xlu0
    %v369 = vpop.trf.xlu0
    %v370 = vpop.trf.xlu0
    %v371 = vpop.trf.xlu0
    %v372 = vpop.trf.xlu0
    %v373 = vpop.trf.xlu0
    %v374 = vpop.trf.xlu0
    %v375 = vpop.trf.xlu0
    %v376 = vpop.trf.xlu0
    %v377 = vpop.trf.xlu0
    %vm378 = vcmask 261120
    %v380 = vsel %vm378, %v362, 0
    %v383 = vsel %vm378, %v363, 0
    %v386 = vsel %vm378, %v364, 0
    %v389 = vsel %vm378, %v365, 0
    %391 = vmatpush.msra.mxu0 0.0
    %392 = vmatpush.msra.mxu0 0.0
    %393 = vmatpush.msra.mxu0 0.0
    %394 = vmatpush.msra.mxu0 0.0
    %395 = vmatpush.msra.mxu0 0.0
    %396 = vmatpush.msra.mxu0 0.0
    %397 = vmatpush.msra.mxu0 0.0
    %398 = vmatpush.msra.mxu0 0.0
    %399 = vmatpush.msra.mxu0 0.0
    %400 = vmatpush.msra.mxu0 0.0
    %401 = vmatpush.msra.mxu0 0.0
    %402 = vmatpush.msra.mxu0 0.0
    %403 = vmatpush.msra.mxu0 %v218
    %404 = vmatpush.msra.mxu0 %v217
    %405 = vmatpush.msra.mxu0 %v216
    %406 = vmatpush.msra.mxu0 %v215
    %407 = vmatmul.f32.gmra.mxu0 %v380
    %v408 = vpop.f32.mrf.mxu0
    %v409 = vadd.f32 %v335, %v408
    %410 = vmatmul.f32.gmra.mxu0 %v383
    %v411 = vpop.f32.mrf.mxu0
    %v412 = vadd.f32 %v338, %v411
    %413 = vmatmul.f32.gmra.mxu0 %v386
    %v414 = vpop.f32.mrf.mxu0
    %v415 = vadd.f32 %v341, %v414
    %416 = vmatmul.f32.gmra.mxu0 %v389
    %v417 = vpop.f32.mrf.mxu0
    %v418 = vadd.f32 %v344, %v417
    %419 = vdwg.mxu0
    %v420 = vld [vmem:[%s6] sm:$0xff]
    %v421 = vld [vmem:[%s6 + $0x8] sm:$0xff]
    %v422 = vld [vmem:[%s6 + $0x10] sm:$0xff]
    %v423 = vld [vmem:[%s6 + $0x18] sm:$0xff]
    %425 = vset.pattern.permute.xlu0 0
    %426 = vperm.xlu0 %425, %v420
    %v427 = vpop.permute.xlu0 %426
    %430 = vset.pattern.permute.xlu0 0
    %431 = vperm.xlu0 %430, %v421
    %v432 = vpop.permute.xlu0 %431
    %435 = vset.pattern.permute.xlu0 0
    %436 = vperm.xlu0 %435, %v422
    %v437 = vpop.permute.xlu0 %436
    %440 = vset.pattern.permute.xlu0 0
    %441 = vperm.xlu0 %440, %v423
    %v442 = vpop.permute.xlu0 %441
    %v444 = vadd.f32 %v409, %v427
    %v445 = vadd.f32 %v412, %v432
    %v446 = vadd.f32 %v415, %v437
    %v447 = vadd.f32 %v418, %v442
    %v448 = vmax.f32 %v444, 0.0
    %v449 = vmax.f32 %v445, 0.0
    %v450 = vmax.f32 %v446, 0.0
    %v451 = vmax.f32 %v447, 0.0
    %v452 = vld [vmem:[%s7] sm:$0xff]
    %v453 = vld [vmem:[%s7 + $0x8] sm:$0xff]
    %v454 = vld [vmem:[%s7 + $0x10] sm:$0xff]
    %v455 = vld [vmem:[%s7 + $0x18] sm:$0xff]
    %v456 = vld [vmem:[#allocation2] sm:$0x1]
    %458 = vset.pattern.permute.xlu0 0
    %459 = vperm.xlu0 %458, %v456
    %v460 = vpop.permute.xlu0 %459
    %v462 = vperm.slane %v460, 0
    %463 = vxpose.xlu0.b32.start [1/16] %v452, 128
    %464 = vxpose.xlu0.b32.cont [2/16] %v453, 128
    %465 = vxpose.xlu0.b32.cont [3/16] %v454, 128
    %466 = vxpose.xlu0.b32.cont [4/16] %v455, 128
    %467 = vxpose.xlu0.b32.cont [5/16] 0.0, 128
    %468 = vxpose.xlu0.b32.cont [6/16] 0.0, 128
    %469 = vxpose.xlu0.b32.cont [7/16] 0.0, 128
    %470 = vxpose.xlu0.b32.cont [8/16] 0.0, 128
    %471 = vxpose.xlu0.b32.cont [9/16] 0.0, 128
    %472 = vxpose.xlu0.b32.cont [10/16] 0.0, 128
    %473 = vxpose.xlu0.b32.cont [11/16] 0.0, 128
    %474 = vxpose.xlu0.b32.cont [12/16] 0.0, 128
    %475 = vxpose.xlu0.b32.cont [13/16] 0.0, 128
    %476 = vxpose.xlu0.b32.cont [14/16] 0.0, 128
    %477 = vxpose.xlu0.b32.cont [15/16] 0.0, 128
    %478 = vxpose.xlu0.b32.end [16/16] 0.0, 128
    %v479 = vpop.trf.xlu0
    %v480 = vpop.trf.xlu0
    %v481 = vpop.trf.xlu0
    %v482 = vpop.trf.xlu0
    %v483 = vpop.trf.xlu0
    %v484 = vpop.trf.xlu0
    %v485 = vpop.trf.xlu0
    %v486 = vpop.trf.xlu0
    %v487 = vpop.trf.xlu0
    %v488 = vpop.trf.xlu0
    %v489 = vpop.trf.xlu0
    %v490 = vpop.trf.xlu0
    %v491 = vpop.trf.xlu0
    %v492 = vpop.trf.xlu0
    %v493 = vpop.trf.xlu0
    %v494 = vpop.trf.xlu0
    %v496 = vsel %vm378, %v479, 0
    %498 = vmatpush.msra.mxu0 0.0
    %499 = vmatpush.msra.mxu0 0.0
    %500 = vmatpush.msra.mxu0 0.0
    %501 = vmatpush.msra.mxu0 0.0
    %502 = vmatpush.msra.mxu0 0.0
    %503 = vmatpush.msra.mxu0 0.0
    %504 = vmatpush.msra.mxu0 0.0
    %505 = vmatpush.msra.mxu0 0.0
    %506 = vmatpush.msra.mxu0 0.0
    %507 = vmatpush.msra.mxu0 0.0
    %508 = vmatpush.msra.mxu0 0.0
    %509 = vmatpush.msra.mxu0 0.0
    %510 = vmatpush.msra.mxu0 %v451
    %511 = vmatpush.msra.mxu0 %v450
    %512 = vmatpush.msra.mxu0 %v449
    %513 = vmatpush.msra.mxu0 %v448
    %514 = vmatmul.f32.gmra.mxu0 %v496
    %v515 = vpop.f32.mrf.mxu0
    %v516 = vadd.f32 %v462, %v515
    %517 = vdwg.mxu0
    %518 = vst [vmem:[#allocation3] sm:$0x1] %v516
    // Predicated region
    $region38: #{tpu_custom_call.1} parent=1 // pred_check
      _
    $region39: #{tpu_custom_call.1} parent=1 // pred_check_branch
      %520 = sbr.rel (0) target = $region41
    $region40: #{tpu_custom_call.1} parent=1 // pred_region
      %522 = vsyncadd [#allocation4], 0
      %s524 = sshll.u32 [#allocation3], 4
      %s525 = int_to_ptr.vmem [resolvable:$true] %s524
      %s526 = sshll.u32 %s9, 4
      %s527 = int_to_ptr.hbm [resolvable:$true] %s526
      %529 = dma.vmem_to_hbm [thread:$0]  %s525, 16, %s527, [#allocation4]
    $region41: #{tpu_custom_call.1} parent=1 // pred_fallthru
      _
    // Predicated region
    $region42: #{tpu_custom_call.1} parent=1 // pred_check
      _
    $region43: #{tpu_custom_call.1} parent=1 // pred_check_branch
      %531 = sbr.rel (0) target = $region45
    $region44: #{tpu_custom_call.1} parent=1 // pred_region
      %533 = dma.done [#allocation4], 16
    $region45: #{tpu_custom_call.1} parent=1 // pred_fallthru
      _
    %534 = vsyncpa [#allocation4], 1

</llo_original>
